<compile_context>
chip_gen: v5e
topology: v5e:2x2
jax: 0.10.0
libtpu: 0.0.40
codegen_flags: <defaults>
</compile_context>

<pallas_src>
import jax
import jax.numpy as jnp
from jax.experimental import pallas as pl
from jax.experimental.pallas import tpu as pltpu

IN_DIM = 4          # CartPole state size
HID_PAD = 128       # hidden dim padded to a full lane width
OUT_PAD = 128       # output dim padded to a full lane width

# Row offsets inside the packed parameter slab (all sublane-(8)-aligned).
W1_ROW = 0                       # rows 0..3   : W1 (4, HID_PAD)
B1_ROW = 8                       # row  8      : b1 (1, HID_PAD)
W2_ROW = 16                      # rows 16..143: W2 (HID_PAD, OUT_PAD)
B2_ROW = W2_ROW + HID_PAD        # row  144    : b2 (1, OUT_PAD)
SLAB_ROWS = 152                  # padded to a multiple of 8


def policy_pi_kernel(x_ref, p_ref, o_ref):
    x = x_ref[...]                                    # (Bt, 4) f32

    # ---- Layer 1 on the VPU: h = relu(x @ W1 + b1), K=4 -> 4 FMAs ----------
    h = p_ref[B1_ROW:B1_ROW + 1, :]                   # (1, HID_PAD) bias
    for k in range(IN_DIM):                           # static unroll
        h = h + x[:, k:k + 1] * p_ref[W1_ROW + k:W1_ROW + k + 1, :]
    h = jnp.maximum(h, 0.0)                           # (Bt, HID_PAD)

    # ---- Layer 2 on the MXU: logits = h @ W2 + b2, lane-dense output -------
    w2 = p_ref[W2_ROW:W2_ROW + HID_PAD, :]            # (HID_PAD, OUT_PAD)
    logits = jnp.dot(h, w2, preferred_element_type=jnp.float32)
    logits = logits + p_ref[B2_ROW:B2_ROW + 1, :]     # (1, OUT_PAD) bias
    o_ref[...] = logits.astype(o_ref.dtype)           # (Bt, OUT_PAD) full vst


def pack_params(w1, b1, w2, b2):
    """Pack (4,H) W1, (H,) b1, (H,2) W2, (2,) b2 into one zero-padded slab.

    Padding columns/rows are zero, so padded hidden lanes produce relu(0)=0
    and padded output lanes stay 0 -> identical logits in columns [:2].
    """
    h = w1.shape[1]
    n_out = w2.shape[1]
    slab = jnp.zeros((SLAB_ROWS, OUT_PAD), jnp.float32)
    slab = slab.at[W1_ROW:W1_ROW + IN_DIM, :h].set(w1.astype(jnp.float32))
    slab = slab.at[B1_ROW, :h].set(b1.reshape(-1).astype(jnp.float32))
    slab = slab.at[W2_ROW:W2_ROW + h, :n_out].set(w2.astype(jnp.float32))
    slab = slab.at[B2_ROW, :n_out].set(b2.reshape(-1).astype(jnp.float32))
    return slab


def policy_pi_forward(x, param_slab, n_out=2):
    """x: (B, 4) f32, param_slab: (152, 128) f32 -> logits: (B, n_out) f32."""
    B = x.shape[0]
    # Batch tile: one block for small B (padded to a sublane multiple of 8),
    # 512-row blocks for large B so the grid can shard across TensorCores.
    if B > 512:
        block_b = 512
    else:
        block_b = max(8, -(-B // 8) * 8)
    b_pad = -(-B // block_b) * block_b
    if b_pad != B:
        x = jnp.pad(x, ((0, b_pad - B), (0, 0)))

    out = pl.pallas_call(
        policy_pi_kernel,
        out_shape=jax.ShapeDtypeStruct((b_pad, OUT_PAD), jnp.float32),
        grid_spec=pltpu.PrefetchScalarGridSpec(
            num_scalar_prefetch=0,
            grid=(b_pad // block_b,),
            in_specs=[
                pl.BlockSpec((block_b, IN_DIM), lambda i: (i, 0)),
                pl.BlockSpec((SLAB_ROWS, OUT_PAD), lambda i: (0, 0)),
            ],
            out_specs=pl.BlockSpec((block_b, OUT_PAD), lambda i: (i, 0)),
        ),
        compiler_params=pltpu.CompilerParams(
            dimension_semantics=("parallel",)),
    )(x, param_slab)
    # Lane-dense padded logits; keep only the 2 real classes.
    return out[:B, :n_out]


def init_params(key, in_dim=4, hidden_dim=64, out_dim=2):
    """Deterministic init mimicking PyTorch nn.Linear (uniform +/- 1/sqrt(fan_in)).

    Weights stored as (in, out), i.e. transposed vs. PyTorch's (out, in).
    """
    k1, k2, k3, k4 = jax.random.split(key, 4)
    lim1 = 1.0 / jnp.sqrt(jnp.float32(in_dim))
    lim2 = 1.0 / jnp.sqrt(jnp.float32(hidden_dim))
    w1 = jax.random.uniform(k1, (in_dim, hidden_dim), jnp.float32, -lim1, lim1)
    b1 = jax.random.uniform(k2, (hidden_dim,), jnp.float32, -lim1, lim1)
    w2 = jax.random.uniform(k3, (hidden_dim, out_dim), jnp.float32, -lim2, lim2)
    b2 = jax.random.uniform(k4, (out_dim,), jnp.float32, -lim2, lim2)
    return w1, b1, w2, b2


if __name__ == "__main__":
    key = jax.random.PRNGKey(0)
    k_params, k_x = jax.random.split(key)

    hidden_dim = 64
    batch = 8
    w1, b1, w2, b2 = init_params(k_params, in_dim=4, hidden_dim=hidden_dim,
                                 out_dim=2)
    param_slab = pack_params(w1, b1, w2, b2)

    # CartPole state batch: (batch, 4)
    x = jax.random.normal(k_x, (batch, 4), jnp.float32)

    logits = policy_pi_forward(x, param_slab)
    logits = jax.block_until_ready(logits)

    # Pure-JAX reference with the original (unpadded) parameters.
    ref = jnp.maximum(x @ w1 + b1[None, :], 0.0) @ w2 + b2[None, :]
    assert logits.shape == (batch, 2)
    assert jnp.allclose(logits, ref, atol=1e-5, rtol=1e-5)

    print("KERNEL_OK")
</pallas_src>

<mosaic_0001>
module attributes {stable_mosaic.version = 11 : i64} {
  func.func @policy_pi_kernel(%arg0: i32, %arg1: memref<8x4xf32, #tpu.memory_space<vmem>>, %arg2: memref<152x128xf32, #tpu.memory_space<vmem>>, %arg3: memref<8x128xf32, #tpu.memory_space<vmem>>) attributes {dimension_semantics = [#tpu.dimension_semantics<parallel>], iteration_bounds = array<i64: 1>, scalar_prefetch = 0 : i64, scratch_operands = 0 : i64, tpu.core_type = #tpu.core_type<tc>, window_params = [{transform_indices = @transform_0, window_bounds = array<i64: 8, 4>}, {pipeline_mode = #tpu.pipeline_mode<synchronous>, transform_indices = @transform_1, window_bounds = array<i64: 152, 128>}, {transform_indices = @transform_2, window_bounds = array<i64: 8, 128>}]} {
    %c0 = arith.constant 0 : index
    %c0_0 = arith.constant 0 : index
    %0 = vector.load %arg1[%c0, %c0_0] : memref<8x4xf32, #tpu.memory_space<vmem>>, vector<8x4xf32>
    %c8 = arith.constant 8 : index
    %c0_1 = arith.constant 0 : index
    %1 = vector.load %arg2[%c8, %c0_1] : memref<152x128xf32, #tpu.memory_space<vmem>>, vector<1x128xf32>
    %2 = vector.extract_strided_slice %0 {offsets = [0, 0], sizes = [8, 1], strides = [1, 1]} : vector<8x4xf32> to vector<8x1xf32>
    %c0_2 = arith.constant 0 : index
    %c0_3 = arith.constant 0 : index
    %3 = vector.load %arg2[%c0_2, %c0_3] : memref<152x128xf32, #tpu.memory_space<vmem>>, vector<1x128xf32>
    %4 = vector.broadcast %2 : vector<8x1xf32> to vector<8x128xf32>
    %5 = vector.broadcast %3 : vector<1x128xf32> to vector<8x128xf32>
    %6 = arith.mulf %4, %5 : vector<8x128xf32>
    %7 = vector.broadcast %1 : vector<1x128xf32> to vector<8x128xf32>
    %8 = arith.addf %7, %6 : vector<8x128xf32>
    %9 = vector.extract_strided_slice %0 {offsets = [0, 1], sizes = [8, 1], strides = [1, 1]} : vector<8x4xf32> to vector<8x1xf32>
    %c1 = arith.constant 1 : index
    %c0_4 = arith.constant 0 : index
    %10 = vector.load %arg2[%c1, %c0_4] : memref<152x128xf32, #tpu.memory_space<vmem>>, vector<1x128xf32>
    %11 = vector.broadcast %9 : vector<8x1xf32> to vector<8x128xf32>
    %12 = vector.broadcast %10 : vector<1x128xf32> to vector<8x128xf32>
    %13 = arith.mulf %11, %12 : vector<8x128xf32>
    %14 = arith.addf %8, %13 : vector<8x128xf32>
    %15 = vector.extract_strided_slice %0 {offsets = [0, 2], sizes = [8, 1], strides = [1, 1]} : vector<8x4xf32> to vector<8x1xf32>
    %c2 = arith.constant 2 : index
    %c0_5 = arith.constant 0 : index
    %16 = vector.load %arg2[%c2, %c0_5] : memref<152x128xf32, #tpu.memory_space<vmem>>, vector<1x128xf32>
    %17 = vector.broadcast %15 : vector<8x1xf32> to vector<8x128xf32>
    %18 = vector.broadcast %16 : vector<1x128xf32> to vector<8x128xf32>
    %19 = arith.mulf %17, %18 : vector<8x128xf32>
    %20 = arith.addf %14, %19 : vector<8x128xf32>
    %21 = vector.extract_strided_slice %0 {offsets = [0, 3], sizes = [8, 1], strides = [1, 1]} : vector<8x4xf32> to vector<8x1xf32>
    %c3 = arith.constant 3 : index
    %c0_6 = arith.constant 0 : index
    %22 = vector.load %arg2[%c3, %c0_6] : memref<152x128xf32, #tpu.memory_space<vmem>>, vector<1x128xf32>
    %23 = vector.broadcast %21 : vector<8x1xf32> to vector<8x128xf32>
    %24 = vector.broadcast %22 : vector<1x128xf32> to vector<8x128xf32>
    %25 = arith.mulf %23, %24 : vector<8x128xf32>
    %26 = arith.addf %20, %25 : vector<8x128xf32>
    %cst = arith.constant 0.000000e+00 : f32
    %27 = vector.broadcast %cst : f32 to vector<8x128xf32>
    %28 = arith.maximumf %26, %27 : vector<8x128xf32>
    %c16 = arith.constant 16 : index
    %c0_7 = arith.constant 0 : index
    %29 = vector.load %arg2[%c16, %c0_7] : memref<152x128xf32, #tpu.memory_space<vmem>>, vector<128x128xf32>
    %cst_8 = arith.constant dense<0.000000e+00> : vector<8x128xf32>
    %30 = tpu.matmul %28, %29, %cst_8 {dimension_numbers = #tpu.dot_dimension_numbers<[1], [0], [0], [1], [0, 0, 1, 1], [], []>} : vector<8x128xf32>, vector<128x128xf32>, vector<8x128xf32> -> vector<8x128xf32>
    %c144 = arith.constant 144 : index
    %c0_9 = arith.constant 0 : index
    %31 = vector.load %arg2[%c144, %c0_9] : memref<152x128xf32, #tpu.memory_space<vmem>>, vector<1x128xf32>
    %32 = vector.broadcast %31 : vector<1x128xf32> to vector<8x128xf32>
    %33 = arith.addf %30, %32 : vector<8x128xf32>
    %c0_10 = arith.constant 0 : index
    %c0_11 = arith.constant 0 : index
    %34 = vector.load %arg3[%c0_10, %c0_11] : memref<8x128xf32, #tpu.memory_space<vmem>>, vector<8x128xf32>
    tpu.vector_store %arg3[%c0_10, %c0_11], %33 {strides = array<i32>} : memref<8x128xf32, #tpu.memory_space<vmem>>, vector<8x128xf32>,
    return
  }
  func.func @transform_0(%arg0: i32) -> (i32, i32) {
    %c0_i32 = arith.constant 0 : i32
    %c0_i32_0 = arith.constant 0 : i32
    return %arg0, %c0_i32 : i32, i32
  }
  func.func @transform_1(%arg0: i32) -> (i32, i32) {
    %c0_i32 = arith.constant 0 : i32
    %c0_i32_0 = arith.constant 0 : i32
    %c0_i32_1 = arith.constant 0 : i32
    return %c0_i32, %c0_i32_0 : i32, i32
  }
  func.func @transform_2(%arg0: i32) -> (i32, i32) {
    %c0_i32 = arith.constant 0 : i32
    %c0_i32_0 = arith.constant 0 : i32
    return %arg0, %c0_i32 : i32, i32
  }
}

</mosaic_0001>

<llo_original>
// kernel: tpu_custom_call.1
$region0: #{tpu_custom_call.1}
  #allocation0 [shape = 'u32[]', space=smem, size = 0x4, offset = 0x4, fixed_abs, tag = 'smem constant byte address 0x4 - core index']
  #allocation1 [shape = 'u32[72,128]{1,0:T(1,128)}', space=vmem, size = 0x9000, scoped, tag = 'internal scratch']
  %s0 = inlined_call_operand.vmem [shape: f32[8,4], index: 0, kind: input, shape index: {}]
  %s1 = inlined_call_operand.hbm [shape: f32[152,128], index: 1, kind: input, shape index: {}]
  %s2 = inlined_call_operand.hbm [shape: f32[8,128], index: 2, kind: output, shape index: {}]
  %s3 = sld [smem:[#allocation0]]
  $region22: #{tpu_custom_call.1} parent=0
    _
  %s5 = ssub.s32 1, %s3
  %s6 = scalar_select 0, %s5, %s3
  $region1: #{tpu_custom_call.1} parent=0
    #allocation2 [shape = 'u8[77824]{0}', space=vmem, size = 0x13000, scoped, tag = 'input window, operand 1, single buffered']
    #allocation3 [shape = 's32[1]{0}', space=sflag, size = 0x4, scoped, tag = 'scoped memory for tpu_custom_call.1']
    #allocation4 [shape = 's32[1]{0}', space=sflag, size = 0x4, scoped, tag = 'scoped memory for tpu_custom_call.1']
    #allocation5 [shape = 'u8[4096]{0}', space=vmem, size = 0x1000, scoped, tag = 'output window, operand 0, single buffered']
    %7 = vsyncpa [#allocation3], 0
    %8 = vsyncpa [#allocation4], 0
    // Predicated region
    $region2: #{tpu_custom_call.1} parent=1 // pred_check
      _
    $region3: #{tpu_custom_call.1} parent=1 // pred_check_branch
      %10 = sbr.rel (0) target = $region5
    $region4: #{tpu_custom_call.1} parent=1 // pred_region
      _
    $region5: #{tpu_custom_call.1} parent=1 // pred_fallthru
      _
    // Predicated region
    $region6: #{tpu_custom_call.1} parent=1 // pred_check
      _
    $region7: #{tpu_custom_call.1} parent=1 // pred_check_branch
      %12 = sbr.rel (0) target = $region9
    $region8: #{tpu_custom_call.1} parent=1 // pred_region
      %14 = vsyncadd [#allocation3], 0
      %s15 = sshll.u32 %s1, 4
      %s16 = int_to_ptr.hbm [resolvable:$true] %s15
      %s17 = sshll.u32 [#allocation2], 4
      %s18 = int_to_ptr.vmem [resolvable:$true] %s17
      %23 = dma.hbm_to_vmem [thread:$0]  %s16, 2432, %s18, [#allocation3], 128, 128, 8
    $region9: #{tpu_custom_call.1} parent=1 // pred_fallthru
      _
    // Predicated region
    $region10: #{tpu_custom_call.1} parent=1 // pred_check
      _
    $region11: #{tpu_custom_call.1} parent=1 // pred_check_branch
      %25 = sbr.rel (0) target = $region13
    $region12: #{tpu_custom_call.1} parent=1 // pred_region
      %27 = dma.done [#allocation3], 2432
    $region13: #{tpu_custom_call.1} parent=1 // pred_fallthru
      _
    %v28 = vld [vmem:[%s0] sm:$0xff]
    %v29 = vld [vmem:[#allocation2 + $0x8] sm:$0x1]
    %v30 = vld [vmem:[#allocation2] sm:$0x1]
    %32 = vset.pattern.permute.xlu0 0
    %33 = vperm.xlu0 %32, %v28
    %v34 = vpop.permute.xlu0 %33
    %v36 = vperm.slane %v30, 0
    %v37 = vmul.f32 %v34, %v36
    %v38 = vperm.slane %v29, 0
    %v39 = vadd.f32 %v38, %v37
    %v40 = vld [vmem:[#allocation2 + $0x1] sm:$0x1]
    %41 = vset.pattern.permute.xlu0 1
    %42 = vperm.xlu0 %41, %v28
    %v43 = vpop.permute.xlu0 %42
    %v45 = vperm.slane %v40, 0
    %v46 = vmul.f32 %v43, %v45
    %v47 = vadd.f32 %v39, %v46
    %v48 = vld [vmem:[#allocation2 + $0x2] sm:$0x1]
    %49 = vset.pattern.permute.xlu0 2
    %50 = vperm.xlu0 %49, %v28
    %v51 = vpop.permute.xlu0 %50
    %v53 = vperm.slane %v48, 0
    %v54 = vmul.f32 %v51, %v53
    %v55 = vadd.f32 %v47, %v54
    %v56 = vld [vmem:[#allocation2 + $0x3] sm:$0x1]
    %57 = vset.pattern.permute.xlu0 3
    %58 = vperm.xlu0 %57, %v28
    %v59 = vpop.permute.xlu0 %58
    %v61 = vperm.slane %v56, 0
    %v62 = vmul.f32 %v59, %v61
    %v63 = vadd.f32 %v55, %v62
    %v64 = vmax.f32 %v63, 0.0
    %v65 = vld [vmem:[#allocation2 + $0x10] sm:$0xff]
    %v66 = vld [vmem:[#allocation2 + $0x18] sm:$0xff]
    %v67 = vld [vmem:[#allocation2 + $0x20] sm:$0xff]
    %v68 = vld [vmem:[#allocation2 + $0x28] sm:$0xff]
    %v69 = vld [vmem:[#allocation2 + $0x30] sm:$0xff]
    %v70 = vld [vmem:[#allocation2 + $0x38] sm:$0xff]
    %v71 = vld [vmem:[#allocation2 + $0x40] sm:$0xff]
    %v72 = vld [vmem:[#allocation2 + $0x48] sm:$0xff]
    %v73 = vld [vmem:[#allocation2 + $0x50] sm:$0xff]
    %v74 = vld [vmem:[#allocation2 + $0x58] sm:$0xff]
    %v75 = vld [vmem:[#allocation2 + $0x60] sm:$0xff]
    %v76 = vld [vmem:[#allocation2 + $0x68] sm:$0xff]
    %v77 = vld [vmem:[#allocation2 + $0x70] sm:$0xff]
    %v78 = vld [vmem:[#allocation2 + $0x78] sm:$0xff]
    %v79 = vld [vmem:[#allocation2 + $0x80] sm:$0xff]
    %v80 = vld [vmem:[#allocation2 + $0x88] sm:$0xff]
    %v81 = vld [vmem:[#allocation2 + $0x90] sm:$0x1]
    %v82 = vperm.slane %v81, 0
    %83 = vmatpush.msra.mxu0 %v80
    %84 = vmatpush.msra.mxu0 %v79
    %85 = vmatpush.msra.mxu0 %v78
    %86 = vmatpush.msra.mxu0 %v77
    %87 = vmatpush.msra.mxu0 %v76
    %88 = vmatpush.msra.mxu0 %v75
    %89 = vmatpush.msra.mxu0 %v74
    %90 = vmatpush.msra.mxu0 %v73
    %91 = vmatpush.msra.mxu0 %v72
    %92 = vmatpush.msra.mxu0 %v71
    %93 = vmatpush.msra.mxu0 %v70
    %94 = vmatpush.msra.mxu0 %v69
    %95 = vmatpush.msra.mxu0 %v68
    %96 = vmatpush.msra.mxu0 %v67
    %97 = vmatpush.msra.mxu0 %v66
    %98 = vmatpush.msra.mxu0 %v65
    %99 = vmatmul.f32.gmra.mxu0 %v64
    %v100 = vpop.f32.mrf.mxu0
    %v101 = vadd.f32 %v82, %v100
    %102 = vdwg.mxu0
    %103 = vst [vmem:[#allocation5] sm:$0xff] %v101
    // Predicated region
    $region14: #{tpu_custom_call.1} parent=1 // pred_check
      _
    $region15: #{tpu_custom_call.1} parent=1 // pred_check_branch
      %105 = sbr.rel (0) target = $region17
    $region16: #{tpu_custom_call.1} parent=1 // pred_region
      %107 = vsyncadd [#allocation4], 0
      %s109 = sshll.u32 [#allocation5], 4
      %s110 = int_to_ptr.vmem [resolvable:$true] %s109
      %s111 = sshll.u32 %s2, 4
      %s112 = int_to_ptr.hbm [resolvable:$true] %s111
      %114 = dma.vmem_to_hbm [thread:$0]  %s110, 128, %s112, [#allocation4]
    $region17: #{tpu_custom_call.1} parent=1 // pred_fallthru
      _
    // Predicated region
    $region18: #{tpu_custom_call.1} parent=1 // pred_check
      _
    $region19: #{tpu_custom_call.1} parent=1 // pred_check_branch
      %116 = sbr.rel (0) target = $region21
    $region20: #{tpu_custom_call.1} parent=1 // pred_region
      %118 = dma.done [#allocation4], 128
    $region21: #{tpu_custom_call.1} parent=1 // pred_fallthru
      _
    %119 = vsyncpa [#allocation3], 1
    %120 = vsyncpa [#allocation4], 1

</llo_original>
